<compile_context>
chip_gen: v6e
topology: v6e:2x2x1
jax: 0.10.0
libtpu: 0.0.40
codegen_flags: <defaults>
</compile_context>

<pallas_src>
import functools

import jax
import jax.numpy as jnp
from jax.experimental import pallas as pl
from jax.experimental.pallas import tpu as pltpu


# ----------------------------------------------------------------------------- helpers
def _round_up(x, m):
    return ((x + m - 1) // m) * m


def _sublane_multiple(itemsize):
    # f32 -> 8, bf16/f16 -> 16, int8/fp8 -> 32 (packed rows per sublane).
    return 8 * (4 // int(itemsize))


def _vmem_capacity_bytes():
    try:
        cap = getattr(pltpu.get_tpu_info(), "vmem_capacity_bytes", None)
        if cap:
            return int(cap)
    except Exception:
        pass
    return 64 << 20  # conservative fallback (v7x per-TC)


def _choose_tiles(rows, cols, itemsize, sub):
    """Pick (row_tile, col_tile).

    Per-input block targets ~2-8 MiB (bounded by a per-generation VMEM budget
    with headroom for 2 inputs x 2 pipeline buffers + in-kernel f32 temps).
    Row tile is a multiple of the dtype sublane count; col tile is either the
    full width or a multiple of 128 lanes.  At least 2 row blocks are produced
    when rows allow, so the "parallel" row axis can shard across v7x's 2 TCs.
    """
    cap = _vmem_capacity_bytes()
    budget = min(cap // 2, 64 << 20)                    # pipeline-buffer budget
    # /8: 2 inputs x 2 buffers + ~2 block-sized f32 temporaries (bf16 worst case).
    block_target = max(1 << 20, min(8 << 20, budget // 8))

    rows_r = _round_up(rows, sub)
    row_bytes = cols * itemsize

    if sub * row_bytes <= block_target:
        # Full-width rows fit the byte target: tile the row axis only.
        tc = cols
        tr = max(sub, ((block_target // row_bytes) // sub) * sub)
    else:
        # Very wide spatial dims: also tile the (reduction) column axis.
        tr = min(rows_r, _round_up(128, sub))
        tc = max(128, ((block_target // (tr * itemsize)) // 128) * 128)
        tc = min(tc, _round_up(cols, 128))
    tr = min(tr, rows_r)

    # Megacore: guarantee >=2 row blocks when rows permit (v7x has 2 TCs).
    if rows_r > sub:
        tr = min(tr, max(sub, _round_up(pl.cdiv(rows, 2), sub)))
    return int(tr), int(tc)


# ----------------------------------------------------------------------------- kernel
def _frob_norm_kernel(x_ref, y_ref, o_ref, *, col_block, total_cols, mask_cols):
    # x_ref / y_ref: (TR, TC) tile (native dtype); o_ref: (TR, 1) f32, resident
    # across the column (reduction) grid axis and used as the accumulator.
    k = pl.program_id(1)

    @pl.when(k == 0)
    def _init():
        o_ref[...] = jnp.zeros_like(o_ref)

    d = x_ref[...].astype(jnp.float32) - y_ref[...].astype(jnp.float32)
    if mask_cols:
        # Partial last column block: zero out columns past the true width so
        # OOB garbage never reaches the sum of squares of valid rows.
        col_ids = k * col_block + jax.lax.broadcasted_iota(
            jnp.int32, d.shape, dimension=1)
        d = jnp.where(col_ids < total_cols, d, jnp.float32(0.0))

    o_ref[...] += jnp.sum(d * d, axis=1, keepdims=True)   # XLU reduce, f32 acc

    @pl.when(k == pl.num_programs(1) - 1)
    def _finish():
        o_ref[...] = jnp.sqrt(o_ref[...])                  # one sqrt per row


# ----------------------------------------------------------------------------- wrapper
def operator_loss(x_predicted, y, a1, *, row_tile=None, col_tile=None):
    """a1 * mean over (b, c) of Frobenius norm over (h, w) of (x - y)."""
    assert x_predicted.shape == y.shape and x_predicted.ndim == 4
    b, c, h, w = x_predicted.shape
    rows, cols = b * c, h * w

    # Keep the native dtype in HBM; upcast to f32 only inside the kernel.
    x2 = x_predicted.reshape(rows, cols)
    y2 = y.reshape(rows, cols)
    itemsize = jnp.dtype(x2.dtype).itemsize
    sub = _sublane_multiple(itemsize)

    tr, tc = _choose_tiles(rows, cols, itemsize, sub)
    if row_tile is not None:  # validate/round caller overrides by dtype
        tr = min(_round_up(int(row_tile), sub), _round_up(rows, sub))
    if col_tile is not None:
        tc = cols if int(col_tile) >= cols else _round_up(int(col_tile), 128)
    mask_cols = (tc != cols) and (cols % tc != 0)

    grid = (pl.cdiv(rows, tr), pl.cdiv(cols, tc))   # reduction axis last

    cap = _vmem_capacity_bytes()
    vmem_limit = int(min(96 << 20, (cap * 3) // 4))  # ~96 MiB v5e/v6e, ~48 MiB v7x

    cost = pl.CostEstimate(
        flops=3 * rows * cols,              # sub + mul + add per element
        transcendentals=rows,               # one sqrt per (b, c) row
        bytes_accessed=2 * rows * cols * itemsize + rows * 4,
    )

    kernel = functools.partial(_frob_norm_kernel, col_block=tc,
                               total_cols=cols, mask_cols=mask_cols)

    norms = pl.pallas_call(
        kernel,
        out_shape=jax.ShapeDtypeStruct((rows, 1), jnp.float32),
        grid_spec=pltpu.PrefetchScalarGridSpec(
            num_scalar_prefetch=0,
            grid=grid,
            in_specs=[
                pl.BlockSpec((tr, tc), lambda i, k: (i, k)),
                pl.BlockSpec((tr, tc), lambda i, k: (i, k)),
            ],
            out_specs=pl.BlockSpec((tr, 1), lambda i, k: (i, 0)),
        ),
        compiler_params=pltpu.CompilerParams(
            dimension_semantics=("parallel", "arbitrary"),
            vmem_limit_bytes=vmem_limit,
        ),
        cost_estimate=cost,
    )(x2, y2)

    # Tiny final reduction in plain JAX: mean over C then B == mean over all
    # B*C rows (equal-size groups), scaled by a1.
    return (jnp.float32(a1) / jnp.float32(rows)) * jnp.sum(norms[:, 0])


def _reference(x, y, a1):
    # Pure-JAX reference mirroring the PyTorch lambdas (f32 math).
    d = x.astype(jnp.float32) - y.astype(jnp.float32)
    norms = jnp.sqrt(jnp.sum(d * d, axis=(2, 3)))   # (B, C)
    return a1 * jnp.mean(jnp.mean(norms, axis=1))


if __name__ == "__main__":
    a1 = 0.5  # deterministic scalar hyperparameter from __init__

    # 1) Module-sized test (auto tiling, single block).
    kx, ky = jax.random.split(jax.random.PRNGKey(0))
    B, C, H, W = 2, 4, 16, 16
    x = jax.random.normal(kx, (B, C, H, W), dtype=jnp.float32)
    y = jax.random.normal(ky, (B, C, H, W), dtype=jnp.float32)
    out = jax.block_until_ready(operator_loss(x, y, a1))
    ref = _reference(x, y, a1)
    assert jnp.allclose(out, ref, rtol=1e-5, atol=1e-5), (out, ref)

    # 2) Multi-row-block grid (row_tile=8 -> 4 row blocks, tests "parallel" axis).
    kx2, ky2 = jax.random.split(jax.random.PRNGKey(1))
    B2, C2, H2, W2 = 4, 8, 16, 16
    x2 = jax.random.normal(kx2, (B2, C2, H2, W2), dtype=jnp.float32)
    y2 = jax.random.normal(ky2, (B2, C2, H2, W2), dtype=jnp.float32)
    out2 = jax.block_until_ready(operator_loss(x2, y2, a1, row_tile=8))
    ref2 = _reference(x2, y2, a1)
    assert jnp.allclose(out2, ref2, rtol=1e-5, atol=1e-5), (out2, ref2)

    # 3) bf16 inputs: DMA'd as bf16, upcast in-kernel; row_tile rounds to 16.
    xb = x2.astype(jnp.bfloat16)
    yb = y2.astype(jnp.bfloat16)
    out3 = jax.block_until_ready(operator_loss(xb, yb, a1, row_tile=8))
    ref3 = _reference(xb, yb, a1)
    assert jnp.allclose(out3, ref3, rtol=2e-2, atol=2e-2), (out3, ref3)

    # 4) Column-tiled reduction with a partial (masked) last column block:
    #    cols = 16*20 = 320, col_tile=128 -> 3 column blocks, tail masked.
    kx3, ky3 = jax.random.split(jax.random.PRNGKey(2))
    x4 = jax.random.normal(kx3, (2, 4, 16, 20), dtype=jnp.float32)
    y4 = jax.random.normal(ky3, (2, 4, 16, 20), dtype=jnp.float32)
    out4 = jax.block_until_ready(operator_loss(x4, y4, a1, col_tile=128))
    ref4 = _reference(x4, y4, a1)
    assert jnp.allclose(out4, ref4, rtol=1e-5, atol=1e-5), (out4, ref4)

    print("KERNEL_OK")
</pallas_src>

<mosaic_0001>
module attributes {stable_mosaic.version = 11 : i64} {
  func.func @_frob_norm_kernel(%arg0: i32, %arg1: i32, %arg2: memref<8x256xf32, #tpu.memory_space<vmem>>, %arg3: memref<8x256xf32, #tpu.memory_space<vmem>>, %arg4: memref<8x1xf32, #tpu.memory_space<vmem>>) attributes {dimension_semantics = [#tpu.dimension_semantics<parallel>, #tpu.dimension_semantics<arbitrary>], iteration_bounds = array<i64: 1, 1>, scalar_prefetch = 0 : i64, scratch_operands = 0 : i64, tpu.core_type = #tpu.core_type<tc>, window_params = [{transform_indices = @transform_0, window_bounds = array<i64: 8, 256>}, {transform_indices = @transform_1, window_bounds = array<i64: 8, 256>}, {transform_indices = @transform_2, window_bounds = array<i64: 8, 1>}]} {
    %c0_i32 = arith.constant 0 : i32
    %0 = arith.cmpi eq, %arg1, %c0_i32 : i32
    %1 = arith.extui %0 : i1 to i32
    %c0_i32_0 = arith.constant 0 : i32
    %2 = arith.cmpi ne, %1, %c0_i32_0 : i32
    scf.if %2 {
      %cst_10 = arith.constant 0.000000e+00 : f32
      %15 = vector.broadcast %cst_10 : f32 to vector<8x1xf32>
      %c0_11 = arith.constant 0 : index
      %c0_12 = arith.constant 0 : index
      %16 = vector.load %arg4[%c0_11, %c0_12] : memref<8x1xf32, #tpu.memory_space<vmem>>, vector<8x1xf32>
      tpu.vector_store %arg4[%c0_11, %c0_12], %15 {strides = array<i32>} : memref<8x1xf32, #tpu.memory_space<vmem>>, vector<8x1xf32>,
    } else {
    }
    %c0 = arith.constant 0 : index
    %c0_1 = arith.constant 0 : index
    %3 = vector.load %arg2[%c0, %c0_1] : memref<8x256xf32, #tpu.memory_space<vmem>>, vector<8x256xf32>
    %c0_2 = arith.constant 0 : index
    %c0_3 = arith.constant 0 : index
    %4 = vector.load %arg3[%c0_2, %c0_3] : memref<8x256xf32, #tpu.memory_space<vmem>>, vector<8x256xf32>
    %5 = arith.subf %3, %4 : vector<8x256xf32>
    %c0_4 = arith.constant 0 : index
    %c0_5 = arith.constant 0 : index
    %6 = vector.load %arg4[%c0_4, %c0_5] : memref<8x1xf32, #tpu.memory_space<vmem>>, vector<8x1xf32>
    %7 = arith.mulf %5, %5 : vector<8x256xf32>
    %cst = arith.constant dense<0.000000e+00> : vector<8xf32>
    %8 = vector.multi_reduction <add>, %7, %cst [1] : vector<8x256xf32> to vector<8xf32>
    %9 = vector.shape_cast %8 : vector<8xf32> to vector<8x1xf32>
    %10 = arith.addf %6, %9 : vector<8x1xf32>
    %c0_6 = arith.constant 0 : index
    %c0_7 = arith.constant 0 : index
    %11 = vector.load %arg4[%c0_6, %c0_7] : memref<8x1xf32, #tpu.memory_space<vmem>>, vector<8x1xf32>
    tpu.vector_store %arg4[%c0_6, %c0_7], %10 {strides = array<i32>} : memref<8x1xf32, #tpu.memory_space<vmem>>, vector<8x1xf32>,
    %c0_i32_8 = arith.constant 0 : i32
    %12 = arith.cmpi eq, %arg1, %c0_i32_8 : i32
    %13 = arith.extui %12 : i1 to i32
    %c0_i32_9 = arith.constant 0 : i32
    %14 = arith.cmpi ne, %13, %c0_i32_9 : i32
    scf.if %14 {
      %c0_10 = arith.constant 0 : index
      %c0_11 = arith.constant 0 : index
      %15 = vector.load %arg4[%c0_10, %c0_11] : memref<8x1xf32, #tpu.memory_space<vmem>>, vector<8x1xf32>
      %16 = math.sqrt %15 : vector<8x1xf32>
      %c0_12 = arith.constant 0 : index
      %c0_13 = arith.constant 0 : index
      %17 = vector.load %arg4[%c0_12, %c0_13] : memref<8x1xf32, #tpu.memory_space<vmem>>, vector<8x1xf32>
      tpu.vector_store %arg4[%c0_12, %c0_13], %16 {strides = array<i32>} : memref<8x1xf32, #tpu.memory_space<vmem>>, vector<8x1xf32>,
    } else {
    }
    return
  }
  func.func @transform_0(%arg0: i32, %arg1: i32) -> (i32, i32) {
    %c0_i32 = arith.constant 0 : i32
    return %arg0, %arg1 : i32, i32
  }
  func.func @transform_1(%arg0: i32, %arg1: i32) -> (i32, i32) {
    %c0_i32 = arith.constant 0 : i32
    return %arg0, %arg1 : i32, i32
  }
  func.func @transform_2(%arg0: i32, %arg1: i32) -> (i32, i32) {
    %c0_i32 = arith.constant 0 : i32
    %c0_i32_0 = arith.constant 0 : i32
    return %arg0, %c0_i32 : i32, i32
  }
}

</mosaic_0001>

<llo_original>
// kernel: tpu_custom_call.1
$region0: #{tpu_custom_call.1}
  #allocation0 [shape = 'u32[]', space=smem, size = 0x4, offset = 0x4, fixed_abs, tag = 'smem constant byte address 0x4 - core index']
  #allocation1 [shape = 'u32[144,128]{1,0:T(1,128)}', space=vmem, size = 0x12000, scoped, tag = 'internal scratch']
  %s0 = inlined_call_operand.hbm [shape: f32[8,256], index: 0, kind: input, shape index: {}]
  %s1 = inlined_call_operand.hbm [shape: f32[8,256], index: 1, kind: input, shape index: {}]
  %s2 = inlined_call_operand.vmem [shape: f32[8,1], index: 2, kind: output, shape index: {}]
  %s3 = sld [smem:[#allocation0]]
  $region34: #{tpu_custom_call.1} parent=0
    _
  %s5 = ssub.s32 1, %s3
  %s6 = scalar_select 0, %s5, %s3
  $region1: #{tpu_custom_call.1} parent=0
    #allocation2 [shape = 'u8[8192]{0}', space=vmem, size = 0x2000, scoped, tag = 'input window, operand 0, single buffered']
    #allocation3 [shape = 's32[1]{0}', space=sflag, size = 0x4, scoped, tag = 'scoped memory for tpu_custom_call.1']
    #allocation4 [shape = 'u8[8192]{0}', space=vmem, size = 0x2000, scoped, tag = 'input window, operand 1, single buffered']
    #allocation5 [shape = 's32[1]{0}', space=sflag, size = 0x4, scoped, tag = 'scoped memory for tpu_custom_call.1']
    %7 = vsyncpa [#allocation3], 0
    %8 = vsyncpa [#allocation5], 0
    // Predicated region
    $region2: #{tpu_custom_call.1} parent=1 // pred_check
      _
    $region3: #{tpu_custom_call.1} parent=1 // pred_check_branch
      %10 = sbr.rel (0) target = $region5
    $region4: #{tpu_custom_call.1} parent=1 // pred_region
      %s12 = ssub.s32 256, 256
      %13 = vsyncadd [#allocation3], %s12
      %s15 = sshll.u32 [#allocation2], 4
      %s16 = int_to_ptr.vmem [resolvable:$true] %s15
      %18 = dma.hbm_to_vmem [thread:$0]  %s0, 256, %s16, [#allocation3]
    $region5: #{tpu_custom_call.1} parent=1 // pred_fallthru
      _
    // Predicated region
    $region6: #{tpu_custom_call.1} parent=1 // pred_check
      _
    $region7: #{tpu_custom_call.1} parent=1 // pred_check_branch
      %20 = sbr.rel (0) target = $region9
    $region8: #{tpu_custom_call.1} parent=1 // pred_region
      %s22 = ssub.s32 256, 256
      %23 = vsyncadd [#allocation5], %s22
      %s25 = sshll.u32 [#allocation4], 4
      %s26 = int_to_ptr.vmem [resolvable:$true] %s25
      %28 = dma.hbm_to_vmem [thread:$0]  %s1, 256, %s26, [#allocation5]
    $region9: #{tpu_custom_call.1} parent=1 // pred_fallthru
      _
    // Predicated region
    $region10: #{tpu_custom_call.1} parent=1 // pred_check
      _
    $region11: #{tpu_custom_call.1} parent=1 // pred_check_branch
      %30 = sbr.rel (0) target = $region13
    $region12: #{tpu_custom_call.1} parent=1 // pred_region
      %31 = dma.done [#allocation3], 256
    $region13: #{tpu_custom_call.1} parent=1 // pred_fallthru
      _
    // Predicated region
    $region14: #{tpu_custom_call.1} parent=1 // pred_check
      _
    $region15: #{tpu_custom_call.1} parent=1 // pred_check_branch
      %33 = sbr.rel (0) target = $region17
    $region16: #{tpu_custom_call.1} parent=1 // pred_region
      %34 = dma.done [#allocation5], 256
    $region17: #{tpu_custom_call.1} parent=1 // pred_fallthru
      _
    %p35 = scmp.eq.s32.totalorder 0, 0
    // Predicated region
    $region18: #{tpu_custom_call.1} parent=1 // pred_check
      %p36 = pneg %p35
    $region19: #{tpu_custom_call.1} parent=1 // pred_check_branch
      %38 = sbr.rel (%p36) target = $region21
    $region20: #{tpu_custom_call.1} parent=1 // pred_region
      %vm39 = vcmask 7168
      %40 = vst.msk [vmem:[%s2] sm:$0xff] %vm39, 0.0
    $region21: #{tpu_custom_call.1} parent=1 // pred_fallthru
      _
    %v41 = vld [vmem:[#allocation2] sm:$0xff]
    %v42 = vld [vmem:[#allocation2 + $0x8] sm:$0xff]
    %v43 = vld [vmem:[#allocation4] sm:$0xff]
    %v44 = vld [vmem:[#allocation4 + $0x8] sm:$0xff]
    %v45 = vsub.f32 %v41, %v43
    %v46 = vsub.f32 %v42, %v44
    %v47 = vld [vmem:[%s2] sm:$0xff]
    %v48 = vmul.f32 %v45, %v45
    %v49 = vmul.f32 %v46, %v46
    %v50 = vadd.f32 %v48, %v49
    %51 = vadd.xlane.f32.xlu0 %v50
    %v52 = vpop.xlane.xlu0 %51
    %v53 = vadd.f32 %v47, %v52
    %vm54 = vcmask 7168
    %55 = vst.msk [vmem:[%s2] sm:$0xff] %vm54, %v53
    // Predicated region
    $region22: #{tpu_custom_call.1} parent=1 // pred_check
      %p56 = pneg %p35
    $region23: #{tpu_custom_call.1} parent=1 // pred_check_branch
      %58 = sbr.rel (%p56) target = $region25
    $region24: #{tpu_custom_call.1} parent=1 // pred_region
      %v59 = vld [vmem:[%s2] sm:$0xff]
      %v60 = vrsqrt.pop %v59
      %v61 = vmul.f32 %v59, %v60
      %vm62 = vcmp.eq.f32.partialorder %v59, inf
      %v63 = vsel %vm62, %v59, %v61
      %vm64 = vcmp.eq.f32.partialorder %v59, 0.0
      %v65 = vand.u32 %v59, 2147483648
      %v66 = vsel %vm64, %v65, %v63
      %67 = vst.msk [vmem:[%s2] sm:$0xff] %vm54, %v66
    $region25: #{tpu_custom_call.1} parent=1 // pred_fallthru
      _
    // Predicated region
    $region26: #{tpu_custom_call.1} parent=1 // pred_check
      _
    $region27: #{tpu_custom_call.1} parent=1 // pred_check_branch
      %69 = sbr.rel (0) target = $region29
    $region28: #{tpu_custom_call.1} parent=1 // pred_region
      _
    $region29: #{tpu_custom_call.1} parent=1 // pred_fallthru
      _
    // Predicated region
    $region30: #{tpu_custom_call.1} parent=1 // pred_check
      _
    $region31: #{tpu_custom_call.1} parent=1 // pred_check_branch
      %71 = sbr.rel (0) target = $region33
    $region32: #{tpu_custom_call.1} parent=1 // pred_region
      _
    $region33: #{tpu_custom_call.1} parent=1 // pred_fallthru
      _
    %72 = vsyncpa [#allocation3], 1
    %73 = vsyncpa [#allocation5], 1

</llo_original>
